<compile_context>
chip_gen: v6e
topology: v6e:2x2x1
jax: 0.10.0
libtpu: 0.0.40
codegen_flags: <defaults>
</compile_context>

<pallas_src>
import math

import numpy as np
import jax
import jax.numpy as jnp
from jax import lax
from jax.experimental import pallas as pl
from jax.experimental.pallas import tpu as pltpu


def _round_up(x, m):
    return ((x + m - 1) // m) * m


def _vmem_capacity_bytes():
    """Physical VMEM of the current TPU; conservative fallback = 64 MiB (v7x per-TC)."""
    try:
        cap = getattr(pltpu.get_tpu_info(), "vmem_capacity_bytes", None)
        if cap:
            return int(cap)
    except Exception:
        pass
    return 64 * 1024 * 1024


def _spec(shape, index_map, pipeline_mode=None):
    if pipeline_mode is None:
        return pl.BlockSpec(shape, index_map)
    return pl.BlockSpec(shape, index_map, pipeline_mode=pipeline_mode)


def _pick_row_tile(R, d_in, hp, x_bytes, gi_bytes, wt_bytes, budget, target=512):
    """Row tile for the input projection: ~target rows, multiple of 8, divides R, and
    (double-buffered x/gi blocks + weights) fits the VMEM budget.  R is a multiple of 8."""
    per_row = 2 * (d_in * x_bytes + 3 * hp * gi_bytes)
    fixed = d_in * 3 * hp * wt_bytes + 3 * hp * 4
    cap_rows = (budget - fixed) // per_row if budget > fixed + 8 * per_row else 8
    t = max(8, min(target, R, int(cap_rows)))
    t -= t % 8
    for cand in range(t, 7, -8):
        if R % cand == 0:
            return cand
    return 8


# ---------------------------------------------------------------------------
# Kernel 1: batched input projection  gi = x @ W_ih^T + b   (all timesteps at once)
# ---------------------------------------------------------------------------
def _input_projection(x2, w_ih_packed, b_packed, *, tm, out_dtype, vmem_limit):
    R, Din = x2.shape
    G = w_ih_packed.shape[1]

    def kernel(x_ref, w_ref, b_ref, o_ref):
        # x_ref: (tm, Din) rows = flattened (time, batch), already in compute dtype
        # w_ref: (Din, 3*Hp) packed [r | z | n], each gate padded to Hp lanes
        # b_ref: (1, 3*Hp) f32: [b_ir+b_hr | b_iz+b_hz | b_in]
        x = x_ref[...].astype(w_ref.dtype)  # no-op on the fast path
        acc = jnp.dot(x, w_ref[...], preferred_element_type=jnp.float32)
        o_ref[...] = (acc + b_ref[...]).astype(o_ref.dtype)

    def build(single_buffer):
        inv = pl.Buffered(1) if single_buffer else None
        return pl.pallas_call(
            kernel,
            out_shape=jax.ShapeDtypeStruct((R, G), out_dtype),
            grid_spec=pltpu.PrefetchScalarGridSpec(
                num_scalar_prefetch=0,
                grid=(R // tm,),
                in_specs=[
                    pl.BlockSpec((tm, Din), lambda i: (i, 0)),
                    _spec((Din, G), lambda i: (0, 0), inv),   # loop-invariant weights
                    _spec((1, G), lambda i: (0, 0), inv),     # loop-invariant bias
                ],
                out_specs=pl.BlockSpec((tm, G), lambda i: (i, 0)),
            ),
            compiler_params=pltpu.CompilerParams(
                dimension_semantics=("parallel",),            # both TCs on v7x
                vmem_limit_bytes=int(vmem_limit),
            ),
        )

    try:
        return build(True)(x2, w_ih_packed, b_packed)
    except Exception:
        # Fallback if this jax version rejects pipeline_mode=pl.Buffered(1).
        return build(False)(x2, w_ih_packed, b_packed)


# ---------------------------------------------------------------------------
# Kernel 2: the recurrence.  grid = (batch_tiles, Tp // chunk), time loop in-kernel.
# ---------------------------------------------------------------------------
def _run_recurrence(gi, whh_packed, b_hn, *, chunk, nb, unroll, out_dtype, vmem_limit):
    Tp, B, G = gi.shape
    Hp = G // 3
    tb = B // nb
    n_chunks = Tp // chunk

    def kernel(gi_ref, whh_ref, bhn_ref, y_ref, h_scr):
        # gi_ref : (chunk, tb, 3*Hp) precomputed input projection (+ folded r/z biases)
        # whh_ref: (Hp, 3*Hp)        packed W_hh^T [r | z | n], compute dtype
        # bhn_ref: (1, Hp)           b_hn (kept separate: it sits inside r * (...))
        # y_ref  : (chunk, tb, Hp)   layer output for this chunk
        # h_scr  : (tb, Hp) f32      hidden state carried across chunks (VMEM scratch)
        c = pl.program_id(1)

        @pl.when(c == 0)
        def _():
            h_scr[...] = jnp.zeros_like(h_scr)  # h0 = 0 per layer / per batch tile

        whh = whh_ref[...]                                          # resident per chunk
        b_hn = jnp.broadcast_to(bhn_ref[...].astype(jnp.float32), (tb, Hp))

        def step(t, h):
            gi_t = gi_ref[t].astype(jnp.float32)                    # (tb, 3*Hp), aligned
            gh = jnp.dot(h.astype(whh.dtype), whh,
                         preferred_element_type=jnp.float32)        # (tb, 3*Hp)
            i_r, i_z, i_n = gi_t[:, :Hp], gi_t[:, Hp:2 * Hp], gi_t[:, 2 * Hp:]
            h_r, h_z, h_n = gh[:, :Hp], gh[:, Hp:2 * Hp], gh[:, 2 * Hp:]
            r = jax.nn.sigmoid(i_r + h_r)          # b_ir + b_hr folded into i_r
            z = jax.nn.sigmoid(i_z + h_z)          # b_iz + b_hz folded into i_z
            n = jnp.tanh(i_n + r * (h_n + b_hn))   # PyTorch n-gate: r * (W_hn h + b_hn)
            h_new = n + z * (h - n)                # == (1 - z) * n + z * h
            y_ref[t] = h_new.astype(y_ref.dtype)   # dense per-chunk VMEM block write
            return h_new

        h_scr[...] = lax.fori_loop(0, chunk, step, h_scr[...], unroll=unroll)

    def build(single_buffer):
        inv = pl.Buffered(1) if single_buffer else None
        return pl.pallas_call(
            kernel,
            out_shape=jax.ShapeDtypeStruct((Tp, B, Hp), out_dtype),
            grid_spec=pltpu.PrefetchScalarGridSpec(
                num_scalar_prefetch=0,
                grid=(nb, n_chunks),
                in_specs=[
                    pl.BlockSpec((chunk, tb, G), lambda b, c: (c, b, 0)),
                    _spec((Hp, G), lambda b, c: (0, 0), inv),   # invariant W_hh^T
                    _spec((1, Hp), lambda b, c: (0, 0), inv),   # invariant b_hn
                ],
                out_specs=pl.BlockSpec((chunk, tb, Hp), lambda b, c: (c, b, 0)),
                scratch_shapes=[pltpu.VMEM((tb, Hp), jnp.float32)],
            ),
            compiler_params=pltpu.CompilerParams(
                # batch tiles independent -> parallel; hidden state carried across time
                dimension_semantics=("parallel", "arbitrary"),
                vmem_limit_bytes=int(vmem_limit),
            ),
        )

    try:
        return build(True)(gi, whh_packed, b_hn)
    except Exception:
        return build(False)(gi, whh_packed, b_hn)


# ---------------------------------------------------------------------------
# Weight packing + forward wrapper
# ---------------------------------------------------------------------------
def _prep_layer_params(p, hidden_dim, hp, d_in, compute_dtype):
    """Pack PyTorch-layout GRU weights into transposed, gate-padded form."""
    H = hidden_dim
    w_ih = jnp.asarray(p["w_ih"], jnp.float32)  # (3H, d_raw)
    w_hh = jnp.asarray(p["w_hh"], jnp.float32)  # (3H, H)
    b_ih = jnp.asarray(p["b_ih"], jnp.float32)  # (3H,)
    b_hh = jnp.asarray(p["b_hh"], jnp.float32)  # (3H,)

    def pack(w, rows, cols):  # (H, d) -> transpose -> zero-pad to (rows, cols)
        wt = w.T
        return jnp.pad(wt, ((0, rows - wt.shape[0]), (0, cols - wt.shape[1])))

    w_ir, w_iz, w_in = jnp.split(w_ih, 3, axis=0)
    w_hr, w_hz, w_hn = jnp.split(w_hh, 3, axis=0)
    w_ih_packed = jnp.concatenate(
        [pack(w_ir, d_in, hp), pack(w_iz, d_in, hp), pack(w_in, d_in, hp)], axis=1)
    whh_packed = jnp.concatenate(
        [pack(w_hr, hp, hp), pack(w_hz, hp, hp), pack(w_hn, hp, hp)], axis=1)

    b_ir, b_iz, b_in = jnp.split(b_ih, 3)
    b_hr, b_hz, b_hn = jnp.split(b_hh, 3)
    padv = lambda v: jnp.pad(v, (0, hp - H))   # padded-lane biases stay exactly 0
    b_packed = jnp.concatenate(
        [padv(b_ir + b_hr), padv(b_iz + b_hz), padv(b_in)]).reshape(1, 3 * hp)
    b_hn_p = padv(b_hn).reshape(1, hp)

    return (w_ih_packed.astype(compute_dtype), whh_packed.astype(compute_dtype),
            b_packed, b_hn_p)


def gru_layer_forward(x_btd, params, *, chunk=128, compute_dtype=jnp.bfloat16):
    """Equivalent of GRULayer.forward: x [B, T, D] -> y [B, T, H].

    `params` is a list of per-layer dicts (w_ih, w_hh, b_ih, b_hh) describing stacked
    nn.GRU layers (batch_first=True); every layer starts from h0 = 0 and the last
    layer's full output sequence is returned, exactly like the PyTorch module.
    """
    x = jnp.asarray(x_btd, jnp.float32)
    B, T, _ = x.shape
    num_layers = len(params)
    H = params[0]["w_hh"].shape[1]
    hp = _round_up(H, 128)  # NOTE(v6e/v7x, 2x256 MXU): a 256 pad could be tried; 128
                            # keeps v5e-optimal padding and half the pad compute.

    is_f32 = np.dtype(compute_dtype) == np.dtype(jnp.float32)
    wt_bytes = np.dtype(compute_dtype).itemsize
    gi_dtype = compute_dtype            # bf16 path: halve gi / activation HBM traffic
    gi_bytes = np.dtype(gi_dtype).itemsize

    # Batch-parallel recurrence axis (v7x 2nd TensorCore) when each half keeps >= 8
    # sublanes; otherwise a single batch tile.
    nb = 2 if (B >= 16 and B % 16 == 0) else 1
    tb = B // nb

    # --- VMEM-budget-aware chunk selection (v7x: 64 MiB, v5e/v6e: 128 MiB) ---------
    vmem_cap = _vmem_capacity_bytes()
    budget = int(vmem_cap * 0.70)                              # compiler-scratch headroom
    fixed_rec = hp * 3 * hp * wt_bytes + hp * 4 + tb * hp * 4  # whh + b_hn + h scratch
    per_t = 2 * tb * 3 * hp * gi_bytes + 2 * tb * hp * 4       # gi + y, double-buffered
    if budget > fixed_rec + 8 * per_t:
        chunk_cap = ((budget - fixed_rec) // per_t // 8) * 8
    else:
        chunk_cap = 8
    # Clamp chunk to round_up(T, 8): at most 7 padded timesteps of dead recurrence work.
    chunk = max(8, (min(chunk, _round_up(T, 8), chunk_cap) // 8) * 8)
    Tp = _round_up(T, chunk)

    rec_need = 2 * hp * 3 * hp * wt_bytes + chunk * per_t + fixed_rec
    rec_limit = min(vmem_cap, max(32 << 20, rec_need + (8 << 20)))

    # Keep vreg pressure of the unrolled step bounded (live set ~ 40 * tb * hp bytes
    # vs the 256 KiB vreg file).
    step_live = 40 * tb * hp
    if step_live <= 64 * 1024:
        unroll = min(8, chunk)
    elif step_live <= 160 * 1024:
        unroll = min(4, chunk)
    else:
        unroll = min(2, chunk)

    # seq-major [Tp, B, D]; padded timesteps come AFTER the real ones, so they never
    # influence the first T outputs.
    x = jnp.transpose(x, (1, 0, 2))
    x = jnp.pad(x, ((0, Tp - T), (0, 0), (0, 0)))
    if not is_f32:
        x = x.astype(compute_dtype)   # halve layer-0 x HBM->VMEM traffic

    for li, p in enumerate(params):
        d_in = x.shape[-1]
        x_bytes = x.dtype.itemsize
        w_ih_p, w_hh_p, b_p, b_hn_p = _prep_layer_params(p, H, hp, d_in, compute_dtype)

        tm = _pick_row_tile(Tp * B, d_in, hp, x_bytes, gi_bytes, wt_bytes, budget)
        proj_need = 2 * tm * (d_in * x_bytes + 3 * hp * gi_bytes) \
            + 2 * d_in * 3 * hp * wt_bytes
        proj_limit = min(vmem_cap, max(32 << 20, proj_need + (8 << 20)))

        gi = _input_projection(x.reshape(Tp * B, d_in), w_ih_p, b_p,
                               tm=tm, out_dtype=gi_dtype, vmem_limit=proj_limit)

        # Intermediate-layer activations stay in compute_dtype (halves the next layer's
        # x read); the last layer is stored in f32 for full-precision output.
        act_dtype = jnp.float32 if li == num_layers - 1 else compute_dtype
        x = _run_recurrence(gi.reshape(Tp, B, 3 * hp), w_hh_p, b_hn_p,
                            chunk=chunk, nb=nb, unroll=unroll,
                            out_dtype=act_dtype, vmem_limit=rec_limit)

    return jnp.transpose(x[:T, :, :H], (1, 0, 2)).astype(jnp.float32)  # [B, T, H]


# ---------------------------------------------------------------------------
# pure-JAX reference (PyTorch nn.GRU semantics) for correctness checking
# ---------------------------------------------------------------------------
def _ref_gru(x_btd, params):
    x = jnp.transpose(jnp.asarray(x_btd, jnp.float32), (1, 0, 2))  # [T, B, D]
    for p in params:
        w_ih, w_hh = p["w_ih"], p["w_hh"]
        b_ih, b_hh = p["b_ih"], p["b_hh"]
        H = w_hh.shape[1]
        h0 = jnp.zeros((x.shape[1], H), jnp.float32)

        def step(h, x_t):
            gi = x_t @ w_ih.T + b_ih
            gh = h @ w_hh.T + b_hh
            i_r, i_z, i_n = jnp.split(gi, 3, axis=-1)
            h_r, h_z, h_n = jnp.split(gh, 3, axis=-1)
            r = jax.nn.sigmoid(i_r + h_r)
            z = jax.nn.sigmoid(i_z + h_z)
            n = jnp.tanh(i_n + r * h_n)
            h_new = (1.0 - z) * n + z * h
            return h_new, h_new

        _, ys = lax.scan(step, h0, x)
        x = ys
    return jnp.transpose(x, (1, 0, 2))


def _init_params(key, input_dim, hidden_dim, num_layers):
    """Deterministic init matching nn.GRU parameter shapes (uniform(-1/sqrt(H), 1/sqrt(H)))."""
    params = []
    bound = 1.0 / math.sqrt(hidden_dim)
    for layer in range(num_layers):
        d_in = input_dim if layer == 0 else hidden_dim
        key, k1, k2, k3, k4 = jax.random.split(key, 5)
        params.append({
            "w_ih": jax.random.uniform(k1, (3 * hidden_dim, d_in), jnp.float32, -bound, bound),
            "w_hh": jax.random.uniform(k2, (3 * hidden_dim, hidden_dim), jnp.float32, -bound, bound),
            "b_ih": jax.random.uniform(k3, (3 * hidden_dim,), jnp.float32, -bound, bound),
            "b_hh": jax.random.uniform(k4, (3 * hidden_dim,), jnp.float32, -bound, bound),
        })
    return params


if __name__ == "__main__":
    # batch=2, seq=8, input_dim=4, hidden=32, 2 stacked GRU layers
    B, T, D, H, L = 2, 8, 4, 32, 2

    key = jax.random.PRNGKey(0)
    kx, kp = jax.random.split(key)
    x = jax.random.normal(kx, (B, T, D), jnp.float32)
    params = _init_params(kp, D, H, L)

    y_ref = jax.block_until_ready(_ref_gru(x, params))

    # f32 MXU operands and f32 gi/activation storage: tight numerical parity check.
    y_f32 = jax.block_until_ready(
        gru_layer_forward(x, params, compute_dtype=jnp.float32))
    assert y_f32.shape == (B, T, H), y_f32.shape
    np.testing.assert_allclose(np.asarray(y_f32), np.asarray(y_ref), rtol=1e-4, atol=1e-4)

    # Default fast path: bf16 matmul operands + bf16 gi / intermediate activations,
    # f32 accumulation, f32 gate math and f32 carried hidden state.
    y_bf16 = jax.block_until_ready(gru_layer_forward(x, params))
    assert y_bf16.shape == (B, T, H), y_bf16.shape
    np.testing.assert_allclose(np.asarray(y_bf16), np.asarray(y_ref), rtol=8e-2, atol=8e-2)

    print("KERNEL_OK")
</pallas_src>

<mosaic_0001>
module attributes {stable_mosaic.version = 11 : i64} {
  func.func @kernel(%arg0: i32, %arg1: memref<16x4xf32, #tpu.memory_space<vmem>>, %arg2: memref<4x384xf32, #tpu.memory_space<vmem>>, %arg3: memref<1x384xf32, #tpu.memory_space<vmem>>, %arg4: memref<16x384xf32, #tpu.memory_space<vmem>>) attributes {dimension_semantics = [#tpu.dimension_semantics<parallel>], iteration_bounds = array<i64: 1>, scalar_prefetch = 0 : i64, scratch_operands = 0 : i64, tpu.core_type = #tpu.core_type<tc>, window_params = [{transform_indices = @transform_0, window_bounds = array<i64: 16, 4>}, {pipeline_mode = #tpu.pipeline_mode<synchronous>, transform_indices = @transform_1, window_bounds = array<i64: 4, 384>}, {pipeline_mode = #tpu.pipeline_mode<synchronous>, transform_indices = @transform_2, window_bounds = array<i64: 1, 384>}, {transform_indices = @transform_3, window_bounds = array<i64: 16, 384>}]} {
    %c0 = arith.constant 0 : index
    %c0_0 = arith.constant 0 : index
    %0 = vector.load %arg1[%c0, %c0_0] : memref<16x4xf32, #tpu.memory_space<vmem>>, vector<16x4xf32>
    %c0_1 = arith.constant 0 : index
    %c0_2 = arith.constant 0 : index
    %1 = vector.load %arg2[%c0_1, %c0_2] : memref<4x384xf32, #tpu.memory_space<vmem>>, vector<4x384xf32>
    %cst = arith.constant dense<0.000000e+00> : vector<16x384xf32>
    %2 = tpu.matmul %0, %1, %cst {dimension_numbers = #tpu.dot_dimension_numbers<[1], [0], [0], [1], [0, 0, 1, 1], [], []>} : vector<16x4xf32>, vector<4x384xf32>, vector<16x384xf32> -> vector<16x384xf32>
    %c0_3 = arith.constant 0 : index
    %c0_4 = arith.constant 0 : index
    %3 = vector.load %arg3[%c0_3, %c0_4] : memref<1x384xf32, #tpu.memory_space<vmem>>, vector<1x384xf32>
    %4 = vector.broadcast %3 : vector<1x384xf32> to vector<16x384xf32>
    %5 = arith.addf %2, %4 : vector<16x384xf32>
    %c0_5 = arith.constant 0 : index
    %c0_6 = arith.constant 0 : index
    %6 = vector.load %arg4[%c0_5, %c0_6] : memref<16x384xf32, #tpu.memory_space<vmem>>, vector<16x384xf32>
    tpu.vector_store %arg4[%c0_5, %c0_6], %5 {strides = array<i32>} : memref<16x384xf32, #tpu.memory_space<vmem>>, vector<16x384xf32>,
    return
  }
  func.func @transform_0(%arg0: i32) -> (i32, i32) {
    %c0_i32 = arith.constant 0 : i32
    %c0_i32_0 = arith.constant 0 : i32
    return %arg0, %c0_i32 : i32, i32
  }
  func.func @transform_1(%arg0: i32) -> (i32, i32) {
    %c0_i32 = arith.constant 0 : i32
    %c0_i32_0 = arith.constant 0 : i32
    %c0_i32_1 = arith.constant 0 : i32
    return %c0_i32, %c0_i32_0 : i32, i32
  }
  func.func @transform_2(%arg0: i32) -> (i32, i32) {
    %c0_i32 = arith.constant 0 : i32
    %c0_i32_0 = arith.constant 0 : i32
    %c0_i32_1 = arith.constant 0 : i32
    return %c0_i32, %c0_i32_0 : i32, i32
  }
  func.func @transform_3(%arg0: i32) -> (i32, i32) {
    %c0_i32 = arith.constant 0 : i32
    %c0_i32_0 = arith.constant 0 : i32
    return %arg0, %c0_i32 : i32, i32
  }
}

module attributes {stable_mosaic.version = 11 : i64} {
  func.func @kernel(%arg0: i32, %arg1: memref<16x4xf32, #tpu.memory_space<vmem>>, %arg2: memref<4x384xf32, #tpu.memory_space<vmem>>, %arg3: memref<1x384xf32, #tpu.memory_space<vmem>>, %arg4: memref<16x384xf32, #tpu.memory_space<vmem>>) attributes {dimension_semantics = [#tpu.dimension_semantics<parallel>], iteration_bounds = array<i64: 1>, scalar_prefetch = 0 : i64, scratch_operands = 0 : i64, tpu.core_type = #tpu.core_type<tc>, window_params = [{transform_indices = @transform_0, window_bounds = array<i64: 16, 4>}, {pipeline_mode = #tpu.pipeline_mode<synchronous>, transform_indices = @transform_1, window_bounds = array<i64: 4, 384>}, {pipeline_mode = #tpu.pipeline_mode<synchronous>, transform_indices = @transform_2, window_bounds = array<i64: 1, 384>}, {transform_indices = @transform_3, window_bounds = array<i64: 16, 384>}]} {
    %c0 = arith.constant 0 : index
    %c0_0 = arith.constant 0 : index
    %0 = vector.load %arg1[%c0, %c0_0] : memref<16x4xf32, #tpu.memory_space<vmem>>, vector<16x4xf32>
    %c0_1 = arith.constant 0 : index
    %c0_2 = arith.constant 0 : index
    %1 = vector.load %arg2[%c0_1, %c0_2] : memref<4x384xf32, #tpu.memory_space<vmem>>, vector<4x384xf32>
    %cst = arith.constant dense<0.000000e+00> : vector<16x384xf32>
    %2 = tpu.matmul %0, %1, %cst {dimension_numbers = #tpu.dot_dimension_numbers<[1], [0], [0], [1], [0, 0, 1, 1], [], []>} : vector<16x4xf32>, vector<4x384xf32>, vector<16x384xf32> -> vector<16x384xf32>
    %c0_3 = arith.constant 0 : index
    %c0_4 = arith.constant 0 : index
    %3 = vector.load %arg3[%c0_3, %c0_4] : memref<1x384xf32, #tpu.memory_space<vmem>>, vector<1x384xf32>
    %4 = vector.broadcast %3 : vector<1x384xf32> to vector<16x384xf32>
    %5 = arith.addf %2, %4 : vector<16x384xf32>
    %c0_5 = arith.constant 0 : index
    %c0_6 = arith.constant 0 : index
    %6 = vector.load %arg4[%c0_5, %c0_6] : memref<16x384xf32, #tpu.memory_space<vmem>>, vector<16x384xf32>
    tpu.vector_store %arg4[%c0_5, %c0_6], %5 {strides = array<i32>} : memref<16x384xf32, #tpu.memory_space<vmem>>, vector<16x384xf32>,
    return
  }
  func.func @transform_0(%arg0: i32) -> (i32, i32) {
    %c0_i32 = arith.constant 0 : i32
    %c0_i32_0 = arith.constant 0 : i32
    return %arg0, %c0_i32 : i32, i32
  }
  func.func @transform_1(%arg0: i32) -> (i32, i32) {
    %c0_i32 = arith.constant 0 : i32
    %c0_i32_0 = arith.constant 0 : i32
    %c0_i32_1 = arith.constant 0 : i32
    return %c0_i32, %c0_i32_0 : i32, i32
  }
  func.func @transform_2(%arg0: i32) -> (i32, i32) {
    %c0_i32 = arith.constant 0 : i32
    %c0_i32_0 = arith.constant 0 : i32
    %c0_i32_1 = arith.constant 0 : i32
    return %c0_i32, %c0_i32_0 : i32, i32
  }
  func.func @transform_3(%arg0: i32) -> (i32, i32) {
    %c0_i32 = arith.constant 0 : i32
    %c0_i32_0 = arith.constant 0 : i32
    return %arg0, %c0_i32 : i32, i32
  }
}

</mosaic_0001>

<llo_original>
// kernel: tpu_custom_call.1
$region0: #{tpu_custom_call.1}
  #allocation0 [shape = 'u32[]', space=smem, size = 0x4, offset = 0x4, fixed_abs, tag = 'smem constant byte address 0x4 - core index']
  #allocation1 [shape = 'u32[144,128]{1,0:T(1,128)}', space=vmem, size = 0x12000, scoped, tag = 'internal scratch']
  %s0 = inlined_call_operand.vmem [shape: f32[16,4], index: 0, kind: input, shape index: {}]
  %s1 = inlined_call_operand.vmem [shape: f32[4,384], index: 1, kind: input, shape index: {}]
  %s2 = inlined_call_operand.vmem [shape: f32[1,384], index: 2, kind: input, shape index: {}]
  %s3 = inlined_call_operand.hbm [shape: f32[16,384], index: 3, kind: output, shape index: {}]
  %s4 = sld [smem:[#allocation0]]
  $region22: #{tpu_custom_call.1} parent=0
    _
  %s6 = ssub.s32 1, %s4
  %s7 = scalar_select 0, %s6, %s4
  $region1: #{tpu_custom_call.1} parent=0
    #allocation2 [shape = 'u8[24576]{0}', space=vmem, size = 0x6000, scoped, tag = 'output window, operand 0, single buffered']
    #allocation3 [shape = 's32[1]{0}', space=sflag, size = 0x4, scoped, tag = 'scoped memory for tpu_custom_call.1']
    %8 = vsyncpa [#allocation3], 0
    // Predicated region
    $region2: #{tpu_custom_call.1} parent=1 // pred_check
      _
    $region3: #{tpu_custom_call.1} parent=1 // pred_check_branch
      %10 = sbr.rel (0) target = $region5
    $region4: #{tpu_custom_call.1} parent=1 // pred_region
      _
    $region5: #{tpu_custom_call.1} parent=1 // pred_fallthru
      _
    // Predicated region
    $region6: #{tpu_custom_call.1} parent=1 // pred_check
      _
    $region7: #{tpu_custom_call.1} parent=1 // pred_check_branch
      %12 = sbr.rel (0) target = $region9
    $region8: #{tpu_custom_call.1} parent=1 // pred_region
      _
    $region9: #{tpu_custom_call.1} parent=1 // pred_fallthru
      _
    // Predicated region
    $region10: #{tpu_custom_call.1} parent=1 // pred_check
      _
    $region11: #{tpu_custom_call.1} parent=1 // pred_check_branch
      %14 = sbr.rel (0) target = $region13
    $region12: #{tpu_custom_call.1} parent=1 // pred_region
      _
    $region13: #{tpu_custom_call.1} parent=1 // pred_fallthru
      _
    %v15 = vld [vmem:[%s0] sm:$0xff]
    %v16 = vld [vmem:[%s0 + $0x8] sm:$0xff]
    %v17 = vld [vmem:[%s1] sm:$0xff]
    %v18 = vld [vmem:[%s1 + $0x8] sm:$0xf]
    %v19 = vld [vmem:[%s2] sm:$0x7]
    %v21 = vlaneseq
    %v22 = vshrl.u32 %v21, 7
    %v23 = vsub.s32 0, %v22
    %v24 = vrot.slane %v19, %v23
    %v25 = vlaneseq
    %v26 = vshrl.u32 %v25, 7
    %v27 = vsub.s32 1, %v26
    %v28 = vrot.slane %v19, %v27
    %v29 = vlaneseq
    %v30 = vshrl.u32 %v29, 7
    %v31 = vsub.s32 2, %v30
    %v32 = vrot.slane %v19, %v31
    %v38 = vcombine.high %v17, %v17
    %vm39 = vcmask 31744
    %v41 = vsel %vm39, %v15, 0
    %v44 = vsel %vm39, %v16, 0
    %vm46 = vcmask 1043456
    %v47 = vsel %vm46, %v17, 0
    %v49 = vsel %vm46, %v38, 0
    %v51 = vsel %vm46, %v18, 0
    %53 = vmatprep.subr.mxu0 0.0
    %54 = vmatpush1.msra.mxu0 0.0
    %55 = vmatprep.subr.mxu0 0.0
    %56 = vmatpush1.msra.mxu0 0.0
    %57 = vmatprep.subr.mxu0 0.0
    %58 = vmatpush1.msra.mxu0 0.0
    %59 = vmatprep.subr.mxu0 0.0
    %60 = vmatpush1.msra.mxu0 0.0
    %61 = vmatprep.subr.mxu0 0.0
    %62 = vmatpush1.msra.mxu0 0.0
    %63 = vmatprep.subr.mxu0 0.0
    %64 = vmatpush1.msra.mxu0 0.0
    %65 = vmatprep.subr.mxu0 0.0
    %66 = vmatpush1.msra.mxu0 0.0
    %67 = vmatprep.subr.mxu0 0.0
    %68 = vmatpush1.msra.mxu0 0.0
    %69 = vmatprep.subr.mxu0 0.0
    %70 = vmatpush1.msra.mxu0 0.0
    %71 = vmatprep.subr.mxu0 0.0
    %72 = vmatpush1.msra.mxu0 0.0
    %73 = vmatprep.subr.mxu0 0.0
    %74 = vmatpush1.msra.mxu0 0.0
    %75 = vmatprep.subr.mxu0 0.0
    %76 = vmatpush1.msra.mxu0 0.0
    %77 = vmatprep.subr.mxu0 0.0
    %78 = vmatpush1.msra.mxu0 0.0
    %79 = vmatprep.subr.mxu0 0.0
    %80 = vmatpush1.msra.mxu0 0.0
    %81 = vmatprep.subr.mxu0 0.0
    %82 = vmatpush1.msra.mxu0 0.0
    %83 = vmatprep.subr.mxu0 %v49
    %84 = vmatpush1.msra.mxu0 %v47
    %85 = vmatprep.subr.mxu0 0.0
    %86 = vmatpush2.msra.mxu0 0.0
    %87 = vmatprep.subr.mxu0 0.0
    %88 = vmatpush2.msra.mxu0 0.0
    %89 = vmatprep.subr.mxu0 0.0
    %90 = vmatpush2.msra.mxu0 0.0
    %91 = vmatprep.subr.mxu0 0.0
    %92 = vmatpush2.msra.mxu0 0.0
    %93 = vmatprep.subr.mxu0 0.0
    %94 = vmatpush2.msra.mxu0 0.0
    %95 = vmatprep.subr.mxu0 0.0
    %96 = vmatpush2.msra.mxu0 0.0
    %97 = vmatprep.subr.mxu0 0.0
    %98 = vmatpush2.msra.mxu0 0.0
    %99 = vmatprep.subr.mxu0 0.0
    %100 = vmatpush2.msra.mxu0 0.0
    %101 = vmatprep.subr.mxu0 0.0
    %102 = vmatpush2.msra.mxu0 0.0
    %103 = vmatprep.subr.mxu0 0.0
    %104 = vmatpush2.msra.mxu0 0.0
    %105 = vmatprep.subr.mxu0 0.0
    %106 = vmatpush2.msra.mxu0 0.0
    %107 = vmatprep.subr.mxu0 0.0
    %108 = vmatpush2.msra.mxu0 0.0
    %109 = vmatprep.subr.mxu0 0.0
    %110 = vmatpush2.msra.mxu0 0.0
    %111 = vmatprep.subr.mxu0 0.0
    %112 = vmatpush2.msra.mxu0 0.0
    %113 = vmatprep.subr.mxu0 0.0
    %114 = vmatpush2.msra.mxu0 0.0
    %115 = vmatprep.subr.mxu0 0.0
    %116 = vmatpush2.msra.mxu0 0.0
    %117 = vmatprep.mubr.f32.mxu0 0.0
    %118 = vmatmul.mubr.f32.gmra.mxu0 %v41
    %v119 = vpop.f32.mrf.mxu0
    %v120 = vadd.f32 %v24, %v119
    %v121 = vpop.f32.mrf.mxu0
    %v122 = vadd.f32 %v28, %v121
    %123 = vmatprep.mubr.f32.mxu0 0.0
    %124 = vmatmul.mubr.f32.gmra.mxu0 %v44
    %v125 = vpop.f32.mrf.mxu0
    %v126 = vadd.f32 %v24, %v125
    %v127 = vpop.f32.mrf.mxu0
    %v128 = vadd.f32 %v28, %v127
    %129 = vdwg.mxu0
    %130 = vmatprep.subr.mxu0 0.0
    %131 = vmatpush1.msra.mxu0 0.0
    %132 = vmatprep.subr.mxu0 0.0
    %133 = vmatpush1.msra.mxu0 0.0
    %134 = vmatprep.subr.mxu0 0.0
    %135 = vmatpush1.msra.mxu0 0.0
    %136 = vmatprep.subr.mxu0 0.0
    %137 = vmatpush1.msra.mxu0 0.0
    %138 = vmatprep.subr.mxu0 0.0
    %139 = vmatpush1.msra.mxu0 0.0
    %140 = vmatprep.subr.mxu0 0.0
    %141 = vmatpush1.msra.mxu0 0.0
    %142 = vmatprep.subr.mxu0 0.0
    %143 = vmatpush1.msra.mxu0 0.0
    %144 = vmatprep.subr.mxu0 0.0
    %145 = vmatpush1.msra.mxu0 0.0
    %146 = vmatprep.subr.mxu0 0.0
    %147 = vmatpush1.msra.mxu0 0.0
    %148 = vmatprep.subr.mxu0 0.0
    %149 = vmatpush1.msra.mxu0 0.0
    %150 = vmatprep.subr.mxu0 0.0
    %151 = vmatpush1.msra.mxu0 0.0
    %152 = vmatprep.subr.mxu0 0.0
    %153 = vmatpush1.msra.mxu0 0.0
    %154 = vmatprep.subr.mxu0 0.0
    %155 = vmatpush1.msra.mxu0 0.0
    %156 = vmatprep.subr.mxu0 0.0
    %157 = vmatpush1.msra.mxu0 0.0
    %158 = vmatprep.subr.mxu0 0.0
    %159 = vmatpush1.msra.mxu0 0.0
    %160 = vmatprep.subr.mxu0 0.0
    %161 = vmatpush1.msra.mxu0 %v51
    %162 = vmatprep.subr.mxu0 0.0
    %163 = vmatpush2.msra.mxu0 0.0
    %164 = vmatprep.subr.mxu0 0.0
    %165 = vmatpush2.msra.mxu0 0.0
    %166 = vmatprep.subr.mxu0 0.0
    %167 = vmatpush2.msra.mxu0 0.0
    %168 = vmatprep.subr.mxu0 0.0
    %169 = vmatpush2.msra.mxu0 0.0
    %170 = vmatprep.subr.mxu0 0.0
    %171 = vmatpush2.msra.mxu0 0.0
    %172 = vmatprep.subr.mxu0 0.0
    %173 = vmatpush2.msra.mxu0 0.0
    %174 = vmatprep.subr.mxu0 0.0
    %175 = vmatpush2.msra.mxu0 0.0
    %176 = vmatprep.subr.mxu0 0.0
    %177 = vmatpush2.msra.mxu0 0.0
    %178 = vmatprep.subr.mxu0 0.0
    %179 = vmatpush2.msra.mxu0 0.0
    %180 = vmatprep.subr.mxu0 0.0
    %181 = vmatpush2.msra.mxu0 0.0
    %182 = vmatprep.subr.mxu0 0.0
    %183 = vmatpush2.msra.mxu0 0.0
    %184 = vmatprep.subr.mxu0 0.0
    %185 = vmatpush2.msra.mxu0 0.0
    %186 = vmatprep.subr.mxu0 0.0
    %187 = vmatpush2.msra.mxu0 0.0
    %188 = vmatprep.subr.mxu0 0.0
    %189 = vmatpush2.msra.mxu0 0.0
    %190 = vmatprep.subr.mxu0 0.0
    %191 = vmatpush2.msra.mxu0 0.0
    %192 = vmatprep.subr.mxu0 0.0
    %193 = vmatpush2.msra.mxu0 0.0
    %194 = vmatprep.mubr.f32.mxu0 0.0
    %195 = vmatmul.mubr.f32.gmra.mxu0 %v41
    %v196 = vpop.f32.mrf.mxu0
    %v197 = vadd.f32 %v32, %v196
    %v198 = vpop.f32.mrf.mxu0
    %199 = vmatprep.mubr.f32.mxu0 0.0
    %200 = vmatmul.mubr.f32.gmra.mxu0 %v44
    %v201 = vpop.f32.mrf.mxu0
    %v202 = vadd.f32 %v32, %v201
    %v203 = vpop.f32.mrf.mxu0
    %204 = vdwg.mxu0
    %205 = vst [vmem:[#allocation2] sm:$0xff] %v120
    %206 = vst [vmem:[#allocation2 + $0x8] sm:$0xff] %v122
    %207 = vst [vmem:[#allocation2 + $0x10] sm:$0xff] %v197
    %208 = vst [vmem:[#allocation2 + $0x18] sm:$0xff] %v126
    %209 = vst [vmem:[#allocation2 + $0x20] sm:$0xff] %v128
    %210 = vst [vmem:[#allocation2 + $0x28] sm:$0xff] %v202
    // Predicated region
    $region14: #{tpu_custom_call.1} parent=1 // pred_check
      _
    $region15: #{tpu_custom_call.1} parent=1 // pred_check_branch
      %212 = sbr.rel (0) target = $region17
    $region16: #{tpu_custom_call.1} parent=1 // pred_region
      %s214 = ssub.s32 768, 768
      %215 = vsyncadd [#allocation3], %s214
      %s216 = sshll.u32 [#allocation2], 4
      %s217 = int_to_ptr.vmem [resolvable:$true] %s216
      %222 = dma.vmem_to_hbm [thread:$0]  %s217, 768, %s3, [#allocation3], 384, 384, 24
    $region17: #{tpu_custom_call.1} parent=1 // pred_fallthru
      _
    // Predicated region
    $region18: #{tpu_custom_call.1} parent=1 // pred_check
      _
    $region19: #{tpu_custom_call.1} parent=1 // pred_check_branch
      %224 = sbr.rel (0) target = $region21
    $region20: #{tpu_custom_call.1} parent=1 // pred_region
      %225 = dma.done [#allocation3], 768
    $region21: #{tpu_custom_call.1} parent=1 // pred_fallthru
      _
    %226 = vsyncpa [#allocation3], 1

// kernel: tpu_custom_call.1
$region0: #{tpu_custom_call.1}
  #allocation0 [shape = 'u32[]', space=smem, size = 0x4, offset = 0x4, fixed_abs, tag = 'smem constant byte address 0x4 - core index']
  #allocation1 [shape = 'u32[144,128]{1,0:T(1,128)}', space=vmem, size = 0x12000, scoped, tag = 'internal scratch']
  %s0 = inlined_call_operand.vmem [shape: f32[16,4], index: 0, kind: input, shape index: {}]
  %s1 = inlined_call_operand.vmem [shape: f32[4,384], index: 1, kind: input, shape index: {}]
  %s2 = inlined_call_operand.vmem [shape: f32[1,384], index: 2, kind: input, shape index: {}]
  %s3 = inlined_call_operand.hbm [shape: f32[16,384], index: 3, kind: output, shape index: {}]
  %s4 = sld [smem:[#allocation0]]
  $region22: #{tpu_custom_call.1} parent=0
    _
  %s6 = ssub.s32 1, %s4
  %s7 = scalar_select 0, %s6, %s4
  $region1: #{tpu_custom_call.1} parent=0
    #allocation2 [shape = 'u8[24576]{0}', space=vmem, size = 0x6000, scoped, tag = 'output window, operand 0, single buffered']
    #allocation3 [shape = 's32[1]{0}', space=sflag, size = 0x4, scoped, tag = 'scoped memory for tpu_custom_call.1']
    %8 = vsyncpa [#allocation3], 0
    // Predicated region
    $region2: #{tpu_custom_call.1} parent=1 // pred_check
      _
    $region3: #{tpu_custom_call.1} parent=1 // pred_check_branch
      %10 = sbr.rel (0) target = $region5
    $region4: #{tpu_custom_call.1} parent=1 // pred_region
      _
    $region5: #{tpu_custom_call.1} parent=1 // pred_fallthru
      _
    // Predicated region
    $region6: #{tpu_custom_call.1} parent=1 // pred_check
      _
    $region7: #{tpu_custom_call.1} parent=1 // pred_check_branch
      %12 = sbr.rel (0) target = $region9
    $region8: #{tpu_custom_call.1} parent=1 // pred_region
      _
    $region9: #{tpu_custom_call.1} parent=1 // pred_fallthru
      _
    // Predicated region
    $region10: #{tpu_custom_call.1} parent=1 // pred_check
      _
    $region11: #{tpu_custom_call.1} parent=1 // pred_check_branch
      %14 = sbr.rel (0) target = $region13
    $region12: #{tpu_custom_call.1} parent=1 // pred_region
      _
    $region13: #{tpu_custom_call.1} parent=1 // pred_fallthru
      _
    %v15 = vld [vmem:[%s0] sm:$0xff]
    %v16 = vld [vmem:[%s0 + $0x8] sm:$0xff]
    %v17 = vld [vmem:[%s1] sm:$0xff]
    %v18 = vld [vmem:[%s1 + $0x8] sm:$0xf]
    %v19 = vld [vmem:[%s2] sm:$0x7]
    %v21 = vlaneseq
    %v22 = vshrl.u32 %v21, 7
    %v23 = vsub.s32 0, %v22
    %v24 = vrot.slane %v19, %v23
    %v25 = vlaneseq
    %v26 = vshrl.u32 %v25, 7
    %v27 = vsub.s32 1, %v26
    %v28 = vrot.slane %v19, %v27
    %v29 = vlaneseq
    %v30 = vshrl.u32 %v29, 7
    %v31 = vsub.s32 2, %v30
    %v32 = vrot.slane %v19, %v31
    %v38 = vcombine.high %v17, %v17
    %vm39 = vcmask 31744
    %v41 = vsel %vm39, %v15, 0
    %v44 = vsel %vm39, %v16, 0
    %vm46 = vcmask 1043456
    %v47 = vsel %vm46, %v17, 0
    %v49 = vsel %vm46, %v38, 0
    %v51 = vsel %vm46, %v18, 0
    %53 = vmatprep.subr.mxu0 0.0
    %54 = vmatpush1.msra.mxu0 0.0
    %55 = vmatprep.subr.mxu0 0.0
    %56 = vmatpush1.msra.mxu0 0.0
    %57 = vmatprep.subr.mxu0 0.0
    %58 = vmatpush1.msra.mxu0 0.0
    %59 = vmatprep.subr.mxu0 0.0
    %60 = vmatpush1.msra.mxu0 0.0
    %61 = vmatprep.subr.mxu0 0.0
    %62 = vmatpush1.msra.mxu0 0.0
    %63 = vmatprep.subr.mxu0 0.0
    %64 = vmatpush1.msra.mxu0 0.0
    %65 = vmatprep.subr.mxu0 0.0
    %66 = vmatpush1.msra.mxu0 0.0
    %67 = vmatprep.subr.mxu0 0.0
    %68 = vmatpush1.msra.mxu0 0.0
    %69 = vmatprep.subr.mxu0 0.0
    %70 = vmatpush1.msra.mxu0 0.0
    %71 = vmatprep.subr.mxu0 0.0
    %72 = vmatpush1.msra.mxu0 0.0
    %73 = vmatprep.subr.mxu0 0.0
    %74 = vmatpush1.msra.mxu0 0.0
    %75 = vmatprep.subr.mxu0 0.0
    %76 = vmatpush1.msra.mxu0 0.0
    %77 = vmatprep.subr.mxu0 0.0
    %78 = vmatpush1.msra.mxu0 0.0
    %79 = vmatprep.subr.mxu0 0.0
    %80 = vmatpush1.msra.mxu0 0.0
    %81 = vmatprep.subr.mxu0 0.0
    %82 = vmatpush1.msra.mxu0 0.0
    %83 = vmatprep.subr.mxu0 %v49
    %84 = vmatpush1.msra.mxu0 %v47
    %85 = vmatprep.subr.mxu0 0.0
    %86 = vmatpush2.msra.mxu0 0.0
    %87 = vmatprep.subr.mxu0 0.0
    %88 = vmatpush2.msra.mxu0 0.0
    %89 = vmatprep.subr.mxu0 0.0
    %90 = vmatpush2.msra.mxu0 0.0
    %91 = vmatprep.subr.mxu0 0.0
    %92 = vmatpush2.msra.mxu0 0.0
    %93 = vmatprep.subr.mxu0 0.0
    %94 = vmatpush2.msra.mxu0 0.0
    %95 = vmatprep.subr.mxu0 0.0
    %96 = vmatpush2.msra.mxu0 0.0
    %97 = vmatprep.subr.mxu0 0.0
    %98 = vmatpush2.msra.mxu0 0.0
    %99 = vmatprep.subr.mxu0 0.0
    %100 = vmatpush2.msra.mxu0 0.0
    %101 = vmatprep.subr.mxu0 0.0
    %102 = vmatpush2.msra.mxu0 0.0
    %103 = vmatprep.subr.mxu0 0.0
    %104 = vmatpush2.msra.mxu0 0.0
    %105 = vmatprep.subr.mxu0 0.0
    %106 = vmatpush2.msra.mxu0 0.0
    %107 = vmatprep.subr.mxu0 0.0
    %108 = vmatpush2.msra.mxu0 0.0
    %109 = vmatprep.subr.mxu0 0.0
    %110 = vmatpush2.msra.mxu0 0.0
    %111 = vmatprep.subr.mxu0 0.0
    %112 = vmatpush2.msra.mxu0 0.0
    %113 = vmatprep.subr.mxu0 0.0
    %114 = vmatpush2.msra.mxu0 0.0
    %115 = vmatprep.subr.mxu0 0.0
    %116 = vmatpush2.msra.mxu0 0.0
    %117 = vmatprep.mubr.f32.mxu0 0.0
    %118 = vmatmul.mubr.f32.gmra.mxu0 %v41
    %v119 = vpop.f32.mrf.mxu0
    %v120 = vadd.f32 %v24, %v119
    %v121 = vpop.f32.mrf.mxu0
    %v122 = vadd.f32 %v28, %v121
    %123 = vmatprep.mubr.f32.mxu0 0.0
    %124 = vmatmul.mubr.f32.gmra.mxu0 %v44
    %v125 = vpop.f32.mrf.mxu0
    %v126 = vadd.f32 %v24, %v125
    %v127 = vpop.f32.mrf.mxu0
    %v128 = vadd.f32 %v28, %v127
    %129 = vdwg.mxu0
    %130 = vmatprep.subr.mxu0 0.0
    %131 = vmatpush1.msra.mxu0 0.0
    %132 = vmatprep.subr.mxu0 0.0
    %133 = vmatpush1.msra.mxu0 0.0
    %134 = vmatprep.subr.mxu0 0.0
    %135 = vmatpush1.msra.mxu0 0.0
    %136 = vmatprep.subr.mxu0 0.0
    %137 = vmatpush1.msra.mxu0 0.0
    %138 = vmatprep.subr.mxu0 0.0
    %139 = vmatpush1.msra.mxu0 0.0
    %140 = vmatprep.subr.mxu0 0.0
    %141 = vmatpush1.msra.mxu0 0.0
    %142 = vmatprep.subr.mxu0 0.0
    %143 = vmatpush1.msra.mxu0 0.0
    %144 = vmatprep.subr.mxu0 0.0
    %145 = vmatpush1.msra.mxu0 0.0
    %146 = vmatprep.subr.mxu0 0.0
    %147 = vmatpush1.msra.mxu0 0.0
    %148 = vmatprep.subr.mxu0 0.0
    %149 = vmatpush1.msra.mxu0 0.0
    %150 = vmatprep.subr.mxu0 0.0
    %151 = vmatpush1.msra.mxu0 0.0
    %152 = vmatprep.subr.mxu0 0.0
    %153 = vmatpush1.msra.mxu0 0.0
    %154 = vmatprep.subr.mxu0 0.0
    %155 = vmatpush1.msra.mxu0 0.0
    %156 = vmatprep.subr.mxu0 0.0
    %157 = vmatpush1.msra.mxu0 0.0
    %158 = vmatprep.subr.mxu0 0.0
    %159 = vmatpush1.msra.mxu0 0.0
    %160 = vmatprep.subr.mxu0 0.0
    %161 = vmatpush1.msra.mxu0 %v51
    %162 = vmatprep.subr.mxu0 0.0
    %163 = vmatpush2.msra.mxu0 0.0
    %164 = vmatprep.subr.mxu0 0.0
    %165 = vmatpush2.msra.mxu0 0.0
    %166 = vmatprep.subr.mxu0 0.0
    %167 = vmatpush2.msra.mxu0 0.0
    %168 = vmatprep.subr.mxu0 0.0
    %169 = vmatpush2.msra.mxu0 0.0
    %170 = vmatprep.subr.mxu0 0.0
    %171 = vmatpush2.msra.mxu0 0.0
    %172 = vmatprep.subr.mxu0 0.0
    %173 = vmatpush2.msra.mxu0 0.0
    %174 = vmatprep.subr.mxu0 0.0
    %175 = vmatpush2.msra.mxu0 0.0
    %176 = vmatprep.subr.mxu0 0.0
    %177 = vmatpush2.msra.mxu0 0.0
    %178 = vmatprep.subr.mxu0 0.0
    %179 = vmatpush2.msra.mxu0 0.0
    %180 = vmatprep.subr.mxu0 0.0
    %181 = vmatpush2.msra.mxu0 0.0
    %182 = vmatprep.subr.mxu0 0.0
    %183 = vmatpush2.msra.mxu0 0.0
    %184 = vmatprep.subr.mxu0 0.0
    %185 = vmatpush2.msra.mxu0 0.0
    %186 = vmatprep.subr.mxu0 0.0
    %187 = vmatpush2.msra.mxu0 0.0
    %188 = vmatprep.subr.mxu0 0.0
    %189 = vmatpush2.msra.mxu0 0.0
    %190 = vmatprep.subr.mxu0 0.0
    %191 = vmatpush2.msra.mxu0 0.0
    %192 = vmatprep.subr.mxu0 0.0
    %193 = vmatpush2.msra.mxu0 0.0
    %194 = vmatprep.mubr.f32.mxu0 0.0
    %195 = vmatmul.mubr.f32.gmra.mxu0 %v41
    %v196 = vpop.f32.mrf.mxu0
    %v197 = vadd.f32 %v32, %v196
    %v198 = vpop.f32.mrf.mxu0
    %199 = vmatprep.mubr.f32.mxu0 0.0
    %200 = vmatmul.mubr.f32.gmra.mxu0 %v44
    %v201 = vpop.f32.mrf.mxu0
    %v202 = vadd.f32 %v32, %v201
    %v203 = vpop.f32.mrf.mxu0
    %204 = vdwg.mxu0
    %205 = vst [vmem:[#allocation2] sm:$0xff] %v120
    %206 = vst [vmem:[#allocation2 + $0x8] sm:$0xff] %v122
    %207 = vst [vmem:[#allocation2 + $0x10] sm:$0xff] %v197
    %208 = vst [vmem:[#allocation2 + $0x18] sm:$0xff] %v126
    %209 = vst [vmem:[#allocation2 + $0x20] sm:$0xff] %v128
    %210 = vst [vmem:[#allocation2 + $0x28] sm:$0xff] %v202
    // Predicated region
    $region14: #{tpu_custom_call.1} parent=1 // pred_check
      _
    $region15: #{tpu_custom_call.1} parent=1 // pred_check_branch
      %212 = sbr.rel (0) target = $region17
    $region16: #{tpu_custom_call.1} parent=1 // pred_region
      %s214 = ssub.s32 768, 768
      %215 = vsyncadd [#allocation3], %s214
      %s216 = sshll.u32 [#allocation2], 4
      %s217 = int_to_ptr.vmem [resolvable:$true] %s216
      %222 = dma.vmem_to_hbm [thread:$0]  %s217, 768, %s3, [#allocation3], 384, 384, 24
    $region17: #{tpu_custom_call.1} parent=1 // pred_fallthru
      _
    // Predicated region
    $region18: #{tpu_custom_call.1} parent=1 // pred_check
      _
    $region19: #{tpu_custom_call.1} parent=1 // pred_check_branch
      %224 = sbr.rel (0) target = $region21
    $region20: #{tpu_custom_call.1} parent=1 // pred_region
      %225 = dma.done [#allocation3], 768
    $region21: #{tpu_custom_call.1} parent=1 // pred_fallthru
      _
    %226 = vsyncpa [#allocation3], 1

</llo_original>
